<compile_context>
chip_gen: v7x
topology: tpu7x:2x2x1
jax: 0.10.0
libtpu: 0.0.40
codegen_flags: <defaults>
</compile_context>

<pallas_src>
import functools

import jax
import jax.numpy as jnp
from jax.experimental import pallas as pl
from jax.experimental.pallas import tpu as pltpu


def _dice_partials_kernel(yt_ref, yp_ref, out_ref, acc_tp, acc_p, acc_oh,
                          *, num_classes):
    """Per-image accumulation of (tp, sum_p, count) per class.

    yt_ref : (1, R, 128)        integer labels block
    yp_ref : (1, C, R, 128)     logits block (class axis leading)
    out_ref: (1, C, 3)          per-image partials [tp, sum_p, count]
    acc_*  : (C, R, 128) f32    full-tile accumulators (element-wise adds)
    """
    i = pl.program_id(1)

    @pl.when(i == 0)
    def _():
        acc_tp[...] = jnp.zeros_like(acc_tp)
        acc_p[...] = jnp.zeros_like(acc_p)
        acc_oh[...] = jnp.zeros_like(acc_oh)

    labels = yt_ref[0].astype(jnp.int32)                       # (R, 128)
    logit = [yp_ref[0, c].astype(jnp.float32)                  # C dense planes
             for c in range(num_classes)]

    # Numerically-stable softmax over the (small, leading) class axis:
    # pure VALU max/add/sub, EUP exp + approx reciprocal. No XLU reductions.
    m = logit[0]
    for c in range(1, num_classes):
        m = jnp.maximum(m, logit[c])
    e = [jnp.exp(logit[c] - m) for c in range(num_classes)]
    s = e[0]
    for c in range(1, num_classes):
        s = s + e[c]
    inv = pl.reciprocal(s, approx=True)                        # EUP slot

    for c in range(num_classes):
        p_c = e[c] * inv
        oh_c = (labels == c).astype(jnp.float32)
        acc_tp[c] += p_c * oh_c
        acc_p[c] += p_c
        acc_oh[c] += oh_c

    @pl.when(i == pl.num_programs(1) - 1)
    def _():
        def _reduce(acc):                                      # (C,R,128)->(C,1)
            t = jnp.sum(acc[...], axis=2, keepdims=True)       # (C, R, 1)
            t = jnp.sum(t, axis=1, keepdims=True)              # (C, 1, 1)
            return t.reshape(num_classes, 1)

        out_ref[...] = jnp.concatenate(
            [_reduce(acc_tp), _reduce(acc_p), _reduce(acc_oh)],
            axis=1)[None]                                      # (1, C, 3)


def _pick_tile_rows(total_rows, target_rows=256):
    """Largest legal tile height (rows of 128 pixels) <= target_rows."""
    if total_rows <= target_rows:
        return total_rows            # full extent -> always a legal block dim
    for r in range(target_rows, 0, -1):
        # multiple of 32 keeps both f32 (8,128) and int8 (32,128) tilings happy
        if total_rows % r == 0 and r % 32 == 0:
            return r
    return total_rows                # fallback: one tile per image


def dice_loss(y_pred, y_true, *, num_classes=3, epsilon=1e-7):
    """y_pred: (N, C, H, W) float logits; y_true: (N, H, W) int labels."""
    N, C, H, W = y_pred.shape
    assert C == num_classes
    hw = H * W
    assert hw % 128 == 0, "H*W must be a multiple of 128"
    total_rows = hw // 128
    tile_rows = _pick_tile_rows(total_rows)
    steps = total_rows // tile_rows

    # Free, contiguous reshapes only — no HBM transpose copy of the logits.
    yp = y_pred.reshape(N, C, total_rows, 128)
    assert jnp.issubdtype(y_true.dtype, jnp.integer)
    yt = y_true.reshape(N, total_rows, 128)   # int8 recommended by caller

    kernel = functools.partial(_dice_partials_kernel, num_classes=num_classes)

    parts = pl.pallas_call(
        kernel,
        out_shape=jax.ShapeDtypeStruct((N, num_classes, 3), jnp.float32),
        grid_spec=pltpu.PrefetchScalarGridSpec(
            num_scalar_prefetch=0,
            grid=(N, steps),
            in_specs=[
                pl.BlockSpec((1, tile_rows, 128),
                             lambda n, i: (n, i, 0)),          # labels
                pl.BlockSpec((1, C, tile_rows, 128),
                             lambda n, i: (n, 0, i, 0)),        # logits
            ],
            out_specs=pl.BlockSpec((1, num_classes, 3),
                                   lambda n, i: (n, 0, 0)),     # per-image partials
            scratch_shapes=[
                pltpu.VMEM((num_classes, tile_rows, 128), jnp.float32),  # tp
                pltpu.VMEM((num_classes, tile_rows, 128), jnp.float32),  # sum_p
                pltpu.VMEM((num_classes, tile_rows, 128), jnp.float32),  # count
            ],
        ),
        compiler_params=pltpu.CompilerParams(
            dimension_semantics=("parallel", "arbitrary")),
    )(yt, yp)

    # Tiny scalar finalize in plain JAX (lets the image axis run in parallel
    # across TensorCores on v7x).
    sums = jnp.sum(parts, axis=0)                 # (C, 3)
    tp = sums[:, 0]
    sum_p = sums[:, 1]
    cnt = sums[:, 2]
    fp = sum_p - tp
    fn = cnt - tp
    f1 = jnp.sum(2.0 * tp / (2.0 * tp + fp + fn + epsilon)) / num_classes
    return 1.0 - f1


def dice_loss_ref(y_pred, y_true, *, num_classes=3, epsilon=1e-7):
    p = jax.nn.softmax(y_pred.astype(jnp.float32), axis=1)            # (N,C,H,W)
    oh = jax.nn.one_hot(y_true, num_classes, dtype=jnp.float32)       # (N,H,W,C)
    oh = jnp.transpose(oh, (0, 3, 1, 2))                              # (N,C,H,W)
    axis = (0, 2, 3)
    tp = jnp.sum(p * oh, axis=axis)
    fp = jnp.sum(p * (1 - oh), axis=axis)
    fn = jnp.sum((1 - p) * oh, axis=axis)
    f1 = jnp.sum(2 * tp / (2 * tp + fp + fn + epsilon)) / num_classes
    return 1.0 - f1


if __name__ == "__main__":
    key = jax.random.PRNGKey(0)
    k1, k2 = jax.random.split(key)

    N, C, H, W = 2, 3, 16, 16
    y_pred = jax.random.normal(k1, (N, C, H, W), dtype=jnp.float32)
    # labels supplied as int8 (num_classes << 128) to minimize HBM traffic
    y_true = jax.random.randint(k2, (N, H, W), 0, C, dtype=jnp.int32).astype(jnp.int8)

    loss = dice_loss(y_pred, y_true, num_classes=C)
    loss = jax.block_until_ready(loss)

    ref = dice_loss_ref(y_pred, y_true.astype(jnp.int32), num_classes=C)
    # tolerance relaxed vs 1e-5 because softmax uses pl.reciprocal(approx=True)
    assert jnp.allclose(loss, ref, atol=1e-3, rtol=1e-3), (loss, ref)

    print("KERNEL_OK")
</pallas_src>

<mosaic_0001>
module attributes {stable_mosaic.version = 11 : i64} {
  func.func @_dice_partials_kernel(%arg0: i32, %arg1: i32, %arg2: memref<1x2x128xi8, #tpu.memory_space<vmem>>, %arg3: memref<1x3x2x128xf32, #tpu.memory_space<vmem>>, %arg4: memref<1x3x3xf32, #tpu.memory_space<vmem>>, %arg5: memref<3x2x128xf32, #tpu.memory_space<vmem>>, %arg6: memref<3x2x128xf32, #tpu.memory_space<vmem>>, %arg7: memref<3x2x128xf32, #tpu.memory_space<vmem>>) attributes {dimension_semantics = [#tpu.dimension_semantics<parallel>, #tpu.dimension_semantics<arbitrary>], iteration_bounds = array<i64: 2, 1>, scalar_prefetch = 0 : i64, scratch_operands = 3 : i64, tpu.core_type = #tpu.core_type<tc>, window_params = [{transform_indices = @transform_0, window_bounds = array<i64: 1, 2, 128>}, {transform_indices = @transform_1, window_bounds = array<i64: 1, 3, 2, 128>}, {transform_indices = @transform_2, window_bounds = array<i64: 1, 3, 3>}]} {
    %c0_i32 = arith.constant 0 : i32
    %0 = arith.cmpi eq, %arg1, %c0_i32 : i32
    %1 = arith.extui %0 : i1 to i32
    %c0_i32_0 = arith.constant 0 : i32
    %2 = arith.cmpi ne, %1, %c0_i32_0 : i32
    scf.if %2 {
      %cst = arith.constant 0.000000e+00 : f32
      %98 = vector.broadcast %cst : f32 to vector<3x2x128xf32>
      %c0_70 = arith.constant 0 : index
      %c0_71 = arith.constant 0 : index
      %c0_72 = arith.constant 0 : index
      %99 = vector.load %arg5[%c0_70, %c0_71, %c0_72] : memref<3x2x128xf32, #tpu.memory_space<vmem>>, vector<3x2x128xf32>
      tpu.vector_store %arg5[%c0_70, %c0_71, %c0_72], %98 {strides = array<i32>} : memref<3x2x128xf32, #tpu.memory_space<vmem>>, vector<3x2x128xf32>,
      %cst_73 = arith.constant 0.000000e+00 : f32
      %100 = vector.broadcast %cst_73 : f32 to vector<3x2x128xf32>
      %c0_74 = arith.constant 0 : index
      %c0_75 = arith.constant 0 : index
      %c0_76 = arith.constant 0 : index
      %101 = vector.load %arg6[%c0_74, %c0_75, %c0_76] : memref<3x2x128xf32, #tpu.memory_space<vmem>>, vector<3x2x128xf32>
      tpu.vector_store %arg6[%c0_74, %c0_75, %c0_76], %100 {strides = array<i32>} : memref<3x2x128xf32, #tpu.memory_space<vmem>>, vector<3x2x128xf32>,
      %cst_77 = arith.constant 0.000000e+00 : f32
      %102 = vector.broadcast %cst_77 : f32 to vector<3x2x128xf32>
      %c0_78 = arith.constant 0 : index
      %c0_79 = arith.constant 0 : index
      %c0_80 = arith.constant 0 : index
      %103 = vector.load %arg7[%c0_78, %c0_79, %c0_80] : memref<3x2x128xf32, #tpu.memory_space<vmem>>, vector<3x2x128xf32>
      tpu.vector_store %arg7[%c0_78, %c0_79, %c0_80], %102 {strides = array<i32>} : memref<3x2x128xf32, #tpu.memory_space<vmem>>, vector<3x2x128xf32>,
    } else {
    }
    %c0 = arith.constant 0 : index
    %c0_1 = arith.constant 0 : index
    %c0_2 = arith.constant 0 : index
    %3 = vector.load %arg2[%c0, %c0_1, %c0_2] : memref<1x2x128xi8, #tpu.memory_space<vmem>>, vector<1x2x128xi8>
    %4 = vector.shape_cast %3 : vector<1x2x128xi8> to vector<2x128xi8>
    %5 = arith.extsi %4 : vector<2x128xi8> to vector<2x128xi32>
    %c0_3 = arith.constant 0 : index
    %c0_4 = arith.constant 0 : index
    %c0_5 = arith.constant 0 : index
    %c0_6 = arith.constant 0 : index
    %6 = vector.load %arg3[%c0_3, %c0_4, %c0_5, %c0_6] : memref<1x3x2x128xf32, #tpu.memory_space<vmem>>, vector<1x1x2x128xf32>
    %7 = vector.shape_cast %6 : vector<1x1x2x128xf32> to vector<2x128xf32>
    %c0_7 = arith.constant 0 : index
    %c1 = arith.constant 1 : index
    %c0_8 = arith.constant 0 : index
    %c0_9 = arith.constant 0 : index
    %8 = vector.load %arg3[%c0_7, %c1, %c0_8, %c0_9] : memref<1x3x2x128xf32, #tpu.memory_space<vmem>>, vector<1x1x2x128xf32>
    %9 = vector.shape_cast %8 : vector<1x1x2x128xf32> to vector<2x128xf32>
    %c0_10 = arith.constant 0 : index
    %c2 = arith.constant 2 : index
    %c0_11 = arith.constant 0 : index
    %c0_12 = arith.constant 0 : index
    %10 = vector.load %arg3[%c0_10, %c2, %c0_11, %c0_12] : memref<1x3x2x128xf32, #tpu.memory_space<vmem>>, vector<1x1x2x128xf32>
    %11 = vector.shape_cast %10 : vector<1x1x2x128xf32> to vector<2x128xf32>
    %12 = arith.maximumf %7, %9 : vector<2x128xf32>
    %13 = arith.maximumf %12, %11 : vector<2x128xf32>
    %14 = arith.subf %7, %13 : vector<2x128xf32>
    %15 = math.exp %14 : vector<2x128xf32>
    %16 = arith.subf %9, %13 : vector<2x128xf32>
    %17 = math.exp %16 : vector<2x128xf32>
    %18 = arith.subf %11, %13 : vector<2x128xf32>
    %19 = math.exp %18 : vector<2x128xf32>
    %20 = arith.addf %15, %17 : vector<2x128xf32>
    %21 = arith.addf %20, %19 : vector<2x128xf32>
    %22 = tpu.reciprocal %21 {approx = true} : vector<2x128xf32> -> vector<2x128xf32>
    %23 = arith.mulf %15, %22 : vector<2x128xf32>
    %c0_i32_13 = arith.constant 0 : i32
    %24 = vector.broadcast %c0_i32_13 : i32 to vector<2x128xi32>
    %25 = arith.cmpi eq, %5, %24 : vector<2x128xi32>
    %26 = arith.extui %25 : vector<2x128xi1> to vector<2x128xi32>
    %27 = arith.sitofp %26 : vector<2x128xi32> to vector<2x128xf32>
    %c0_14 = arith.constant 0 : index
    %c0_15 = arith.constant 0 : index
    %c0_16 = arith.constant 0 : index
    %28 = vector.load %arg5[%c0_14, %c0_15, %c0_16] : memref<3x2x128xf32, #tpu.memory_space<vmem>>, vector<1x2x128xf32>
    %29 = vector.shape_cast %28 : vector<1x2x128xf32> to vector<2x128xf32>
    %30 = arith.mulf %23, %27 : vector<2x128xf32>
    %31 = arith.addf %29, %30 : vector<2x128xf32>
    %c0_17 = arith.constant 0 : index
    %c0_18 = arith.constant 0 : index
    %c0_19 = arith.constant 0 : index
    %32 = vector.load %arg5[%c0_17, %c0_18, %c0_19] : memref<3x2x128xf32, #tpu.memory_space<vmem>>, vector<1x2x128xf32>
    %33 = vector.shape_cast %32 : vector<1x2x128xf32> to vector<2x128xf32>
    %34 = vector.shape_cast %31 : vector<2x128xf32> to vector<1x2x128xf32>
    tpu.vector_store %arg5[%c0_17, %c0_18, %c0_19], %34 {strides = array<i32>} : memref<3x2x128xf32, #tpu.memory_space<vmem>>, vector<1x2x128xf32>,
    %c0_20 = arith.constant 0 : index
    %c0_21 = arith.constant 0 : index
    %c0_22 = arith.constant 0 : index
    %35 = vector.load %arg6[%c0_20, %c0_21, %c0_22] : memref<3x2x128xf32, #tpu.memory_space<vmem>>, vector<1x2x128xf32>
    %36 = vector.shape_cast %35 : vector<1x2x128xf32> to vector<2x128xf32>
    %37 = arith.addf %36, %23 : vector<2x128xf32>
    %c0_23 = arith.constant 0 : index
    %c0_24 = arith.constant 0 : index
    %c0_25 = arith.constant 0 : index
    %38 = vector.load %arg6[%c0_23, %c0_24, %c0_25] : memref<3x2x128xf32, #tpu.memory_space<vmem>>, vector<1x2x128xf32>
    %39 = vector.shape_cast %38 : vector<1x2x128xf32> to vector<2x128xf32>
    %40 = vector.shape_cast %37 : vector<2x128xf32> to vector<1x2x128xf32>
    tpu.vector_store %arg6[%c0_23, %c0_24, %c0_25], %40 {strides = array<i32>} : memref<3x2x128xf32, #tpu.memory_space<vmem>>, vector<1x2x128xf32>,
    %c0_26 = arith.constant 0 : index
    %c0_27 = arith.constant 0 : index
    %c0_28 = arith.constant 0 : index
    %41 = vector.load %arg7[%c0_26, %c0_27, %c0_28] : memref<3x2x128xf32, #tpu.memory_space<vmem>>, vector<1x2x128xf32>
    %42 = vector.shape_cast %41 : vector<1x2x128xf32> to vector<2x128xf32>
    %43 = arith.addf %42, %27 : vector<2x128xf32>
    %c0_29 = arith.constant 0 : index
    %c0_30 = arith.constant 0 : index
    %c0_31 = arith.constant 0 : index
    %44 = vector.load %arg7[%c0_29, %c0_30, %c0_31] : memref<3x2x128xf32, #tpu.memory_space<vmem>>, vector<1x2x128xf32>
    %45 = vector.shape_cast %44 : vector<1x2x128xf32> to vector<2x128xf32>
    %46 = vector.shape_cast %43 : vector<2x128xf32> to vector<1x2x128xf32>
    tpu.vector_store %arg7[%c0_29, %c0_30, %c0_31], %46 {strides = array<i32>} : memref<3x2x128xf32, #tpu.memory_space<vmem>>, vector<1x2x128xf32>,
    %47 = arith.mulf %17, %22 : vector<2x128xf32>
    %c1_i32 = arith.constant 1 : i32
    %48 = vector.broadcast %c1_i32 : i32 to vector<2x128xi32>
    %49 = arith.cmpi eq, %5, %48 : vector<2x128xi32>
    %50 = arith.extui %49 : vector<2x128xi1> to vector<2x128xi32>
    %51 = arith.sitofp %50 : vector<2x128xi32> to vector<2x128xf32>
    %c1_32 = arith.constant 1 : index
    %c0_33 = arith.constant 0 : index
    %c0_34 = arith.constant 0 : index
    %52 = vector.load %arg5[%c1_32, %c0_33, %c0_34] : memref<3x2x128xf32, #tpu.memory_space<vmem>>, vector<1x2x128xf32>
    %53 = vector.shape_cast %52 : vector<1x2x128xf32> to vector<2x128xf32>
    %54 = arith.mulf %47, %51 : vector<2x128xf32>
    %55 = arith.addf %53, %54 : vector<2x128xf32>
    %c1_35 = arith.constant 1 : index
    %c0_36 = arith.constant 0 : index
    %c0_37 = arith.constant 0 : index
    %56 = vector.load %arg5[%c1_35, %c0_36, %c0_37] : memref<3x2x128xf32, #tpu.memory_space<vmem>>, vector<1x2x128xf32>
    %57 = vector.shape_cast %56 : vector<1x2x128xf32> to vector<2x128xf32>
    %58 = vector.shape_cast %55 : vector<2x128xf32> to vector<1x2x128xf32>
    tpu.vector_store %arg5[%c1_35, %c0_36, %c0_37], %58 {strides = array<i32>} : memref<3x2x128xf32, #tpu.memory_space<vmem>>, vector<1x2x128xf32>,
    %c1_38 = arith.constant 1 : index
    %c0_39 = arith.constant 0 : index
    %c0_40 = arith.constant 0 : index
    %59 = vector.load %arg6[%c1_38, %c0_39, %c0_40] : memref<3x2x128xf32, #tpu.memory_space<vmem>>, vector<1x2x128xf32>
    %60 = vector.shape_cast %59 : vector<1x2x128xf32> to vector<2x128xf32>
    %61 = arith.addf %60, %47 : vector<2x128xf32>
    %c1_41 = arith.constant 1 : index
    %c0_42 = arith.constant 0 : index
    %c0_43 = arith.constant 0 : index
    %62 = vector.load %arg6[%c1_41, %c0_42, %c0_43] : memref<3x2x128xf32, #tpu.memory_space<vmem>>, vector<1x2x128xf32>
    %63 = vector.shape_cast %62 : vector<1x2x128xf32> to vector<2x128xf32>
    %64 = vector.shape_cast %61 : vector<2x128xf32> to vector<1x2x128xf32>
    tpu.vector_store %arg6[%c1_41, %c0_42, %c0_43], %64 {strides = array<i32>} : memref<3x2x128xf32, #tpu.memory_space<vmem>>, vector<1x2x128xf32>,
    %c1_44 = arith.constant 1 : index
    %c0_45 = arith.constant 0 : index
    %c0_46 = arith.constant 0 : index
    %65 = vector.load %arg7[%c1_44, %c0_45, %c0_46] : memref<3x2x128xf32, #tpu.memory_space<vmem>>, vector<1x2x128xf32>
    %66 = vector.shape_cast %65 : vector<1x2x128xf32> to vector<2x128xf32>
    %67 = arith.addf %66, %51 : vector<2x128xf32>
    %c1_47 = arith.constant 1 : index
    %c0_48 = arith.constant 0 : index
    %c0_49 = arith.constant 0 : index
    %68 = vector.load %arg7[%c1_47, %c0_48, %c0_49] : memref<3x2x128xf32, #tpu.memory_space<vmem>>, vector<1x2x128xf32>
    %69 = vector.shape_cast %68 : vector<1x2x128xf32> to vector<2x128xf32>
    %70 = vector.shape_cast %67 : vector<2x128xf32> to vector<1x2x128xf32>
    tpu.vector_store %arg7[%c1_47, %c0_48, %c0_49], %70 {strides = array<i32>} : memref<3x2x128xf32, #tpu.memory_space<vmem>>, vector<1x2x128xf32>,
    %71 = arith.mulf %19, %22 : vector<2x128xf32>
    %c2_i32 = arith.constant 2 : i32
    %72 = vector.broadcast %c2_i32 : i32 to vector<2x128xi32>
    %73 = arith.cmpi eq, %5, %72 : vector<2x128xi32>
    %74 = arith.extui %73 : vector<2x128xi1> to vector<2x128xi32>
    %75 = arith.sitofp %74 : vector<2x128xi32> to vector<2x128xf32>
    %c2_50 = arith.constant 2 : index
    %c0_51 = arith.constant 0 : index
    %c0_52 = arith.constant 0 : index
    %76 = vector.load %arg5[%c2_50, %c0_51, %c0_52] : memref<3x2x128xf32, #tpu.memory_space<vmem>>, vector<1x2x128xf32>
    %77 = vector.shape_cast %76 : vector<1x2x128xf32> to vector<2x128xf32>
    %78 = arith.mulf %71, %75 : vector<2x128xf32>
    %79 = arith.addf %77, %78 : vector<2x128xf32>
    %c2_53 = arith.constant 2 : index
    %c0_54 = arith.constant 0 : index
    %c0_55 = arith.constant 0 : index
    %80 = vector.load %arg5[%c2_53, %c0_54, %c0_55] : memref<3x2x128xf32, #tpu.memory_space<vmem>>, vector<1x2x128xf32>
    %81 = vector.shape_cast %80 : vector<1x2x128xf32> to vector<2x128xf32>
    %82 = vector.shape_cast %79 : vector<2x128xf32> to vector<1x2x128xf32>
    tpu.vector_store %arg5[%c2_53, %c0_54, %c0_55], %82 {strides = array<i32>} : memref<3x2x128xf32, #tpu.memory_space<vmem>>, vector<1x2x128xf32>,
    %c2_56 = arith.constant 2 : index
    %c0_57 = arith.constant 0 : index
    %c0_58 = arith.constant 0 : index
    %83 = vector.load %arg6[%c2_56, %c0_57, %c0_58] : memref<3x2x128xf32, #tpu.memory_space<vmem>>, vector<1x2x128xf32>
    %84 = vector.shape_cast %83 : vector<1x2x128xf32> to vector<2x128xf32>
    %85 = arith.addf %84, %71 : vector<2x128xf32>
    %c2_59 = arith.constant 2 : index
    %c0_60 = arith.constant 0 : index
    %c0_61 = arith.constant 0 : index
    %86 = vector.load %arg6[%c2_59, %c0_60, %c0_61] : memref<3x2x128xf32, #tpu.memory_space<vmem>>, vector<1x2x128xf32>
    %87 = vector.shape_cast %86 : vector<1x2x128xf32> to vector<2x128xf32>
    %88 = vector.shape_cast %85 : vector<2x128xf32> to vector<1x2x128xf32>
    tpu.vector_store %arg6[%c2_59, %c0_60, %c0_61], %88 {strides = array<i32>} : memref<3x2x128xf32, #tpu.memory_space<vmem>>, vector<1x2x128xf32>,
    %c2_62 = arith.constant 2 : index
    %c0_63 = arith.constant 0 : index
    %c0_64 = arith.constant 0 : index
    %89 = vector.load %arg7[%c2_62, %c0_63, %c0_64] : memref<3x2x128xf32, #tpu.memory_space<vmem>>, vector<1x2x128xf32>
    %90 = vector.shape_cast %89 : vector<1x2x128xf32> to vector<2x128xf32>
    %91 = arith.addf %90, %75 : vector<2x128xf32>
    %c2_65 = arith.constant 2 : index
    %c0_66 = arith.constant 0 : index
    %c0_67 = arith.constant 0 : index
    %92 = vector.load %arg7[%c2_65, %c0_66, %c0_67] : memref<3x2x128xf32, #tpu.memory_space<vmem>>, vector<1x2x128xf32>
    %93 = vector.shape_cast %92 : vector<1x2x128xf32> to vector<2x128xf32>
    %94 = vector.shape_cast %91 : vector<2x128xf32> to vector<1x2x128xf32>
    tpu.vector_store %arg7[%c2_65, %c0_66, %c0_67], %94 {strides = array<i32>} : memref<3x2x128xf32, #tpu.memory_space<vmem>>, vector<1x2x128xf32>,
    %c0_i32_68 = arith.constant 0 : i32
    %95 = arith.cmpi eq, %arg1, %c0_i32_68 : i32
    %96 = arith.extui %95 : i1 to i32
    %c0_i32_69 = arith.constant 0 : i32
    %97 = arith.cmpi ne, %96, %c0_i32_69 : i32
    scf.if %97 {
      %c0_70 = arith.constant 0 : index
      %c0_71 = arith.constant 0 : index
      %c0_72 = arith.constant 0 : index
      %98 = vector.load %arg5[%c0_70, %c0_71, %c0_72] : memref<3x2x128xf32, #tpu.memory_space<vmem>>, vector<3x2x128xf32>
      %cst = arith.constant dense<0.000000e+00> : vector<3x2xf32>
      %99 = vector.multi_reduction <add>, %98, %cst [2] : vector<3x2x128xf32> to vector<3x2xf32>
      %100 = vector.shape_cast %99 : vector<3x2xf32> to vector<3x2x1xf32>
      %cst_73 = arith.constant dense<0.000000e+00> : vector<3x1xf32>
      %101 = vector.multi_reduction <add>, %100, %cst_73 [1] : vector<3x2x1xf32> to vector<3x1xf32>
      %102 = vector.shape_cast %101 : vector<3x1xf32> to vector<3x1x1xf32>
      %103 = vector.shape_cast %102 : vector<3x1x1xf32> to vector<3x1xf32>
      %c0_74 = arith.constant 0 : index
      %c0_75 = arith.constant 0 : index
      %c0_76 = arith.constant 0 : index
      %104 = vector.load %arg6[%c0_74, %c0_75, %c0_76] : memref<3x2x128xf32, #tpu.memory_space<vmem>>, vector<3x2x128xf32>
      %cst_77 = arith.constant dense<0.000000e+00> : vector<3x2xf32>
      %105 = vector.multi_reduction <add>, %104, %cst_77 [2] : vector<3x2x128xf32> to vector<3x2xf32>
      %106 = vector.shape_cast %105 : vector<3x2xf32> to vector<3x2x1xf32>
      %cst_78 = arith.constant dense<0.000000e+00> : vector<3x1xf32>
      %107 = vector.multi_reduction <add>, %106, %cst_78 [1] : vector<3x2x1xf32> to vector<3x1xf32>
      %108 = vector.shape_cast %107 : vector<3x1xf32> to vector<3x1x1xf32>
      %109 = vector.shape_cast %108 : vector<3x1x1xf32> to vector<3x1xf32>
      %c0_79 = arith.constant 0 : index
      %c0_80 = arith.constant 0 : index
      %c0_81 = arith.constant 0 : index
      %110 = vector.load %arg7[%c0_79, %c0_80, %c0_81] : memref<3x2x128xf32, #tpu.memory_space<vmem>>, vector<3x2x128xf32>
      %cst_82 = arith.constant dense<0.000000e+00> : vector<3x2xf32>
      %111 = vector.multi_reduction <add>, %110, %cst_82 [2] : vector<3x2x128xf32> to vector<3x2xf32>
      %112 = vector.shape_cast %111 : vector<3x2xf32> to vector<3x2x1xf32>
      %cst_83 = arith.constant dense<0.000000e+00> : vector<3x1xf32>
      %113 = vector.multi_reduction <add>, %112, %cst_83 [1] : vector<3x2x1xf32> to vector<3x1xf32>
      %114 = vector.shape_cast %113 : vector<3x1xf32> to vector<3x1x1xf32>
      %115 = vector.shape_cast %114 : vector<3x1x1xf32> to vector<3x1xf32>
      %116 = tpu.concatenate %103, %109, %115 in 1 : vector<3x1xf32>, vector<3x1xf32>, vector<3x1xf32> -> vector<3x3xf32>
      %117 = vector.shape_cast %116 : vector<3x3xf32> to vector<1x3x3xf32>
      %c0_84 = arith.constant 0 : index
      %c0_85 = arith.constant 0 : index
      %c0_86 = arith.constant 0 : index
      %118 = vector.load %arg4[%c0_84, %c0_85, %c0_86] : memref<1x3x3xf32, #tpu.memory_space<vmem>>, vector<1x3x3xf32>
      tpu.vector_store %arg4[%c0_84, %c0_85, %c0_86], %117 {strides = array<i32>} : memref<1x3x3xf32, #tpu.memory_space<vmem>>, vector<1x3x3xf32>,
    } else {
    }
    return
  }
  func.func @transform_0(%arg0: i32, %arg1: i32) -> (i32, i32, i32) {
    %c0_i32 = arith.constant 0 : i32
    %c0_i32_0 = arith.constant 0 : i32
    return %arg0, %arg1, %c0_i32 : i32, i32, i32
  }
  func.func @transform_1(%arg0: i32, %arg1: i32) -> (i32, i32, i32, i32) {
    %c0_i32 = arith.constant 0 : i32
    %c0_i32_0 = arith.constant 0 : i32
    %c0_i32_1 = arith.constant 0 : i32
    return %arg0, %c0_i32, %arg1, %c0_i32_0 : i32, i32, i32, i32
  }
  func.func @transform_2(%arg0: i32, %arg1: i32) -> (i32, i32, i32) {
    %c0_i32 = arith.constant 0 : i32
    %c0_i32_0 = arith.constant 0 : i32
    %c0_i32_1 = arith.constant 0 : i32
    return %arg0, %c0_i32, %c0_i32_0 : i32, i32, i32
  }
}

</mosaic_0001>

<llo_original>
// kernel: tpu_custom_call.1
$region0: #{tpu_custom_call.1}
  #allocation0 [shape = 'u32[]', space=smem, size = 0x4, offset = 0x4, fixed_abs, tag = 'smem constant byte address 0x4 - core index']
  #allocation1 [shape = 'u32[144,128]{1,0:T(1,128)}', space=vmem, size = 0x12000, scoped, tag = 'internal scratch']
  #allocation2 [shape = 'f32[3,2,128]{2,1,0:T(2,128)}', space=vmem, size = 0xc00, scoped, tag = 'scratch operand']
  #allocation3 [shape = 'f32[3,2,128]{2,1,0:T(2,128)}', space=vmem, size = 0xc00, scoped, tag = 'scratch operand']
  #allocation4 [shape = 'f32[3,2,128]{2,1,0:T(2,128)}', space=vmem, size = 0xc00, scoped, tag = 'scratch operand']
  %s0 = inlined_call_operand.hbm [shape: s8[2,2,128], index: 0, kind: input, shape index: {}]
  %s1 = inlined_call_operand.hbm [shape: f32[2,3,2,128], index: 1, kind: input, shape index: {}]
  %s2 = inlined_call_operand.vmem [shape: f32[2,3,3], index: 2, kind: output, shape index: {}]
  %s3 = sld [smem:[#allocation0]]
  $region57: #{tpu_custom_call.1} parent=0
    _
  %s5 = ssub.s32 1, %s3
  %s6 = scalar_select 0, %s5, %s3
  $region1: #{tpu_custom_call.1} parent=0
    #allocation5 [shape = 'u8[1024]{0}', space=vmem, size = 0x400, scoped, tag = 'input window, operand 0']
    #allocation6 [shape = 's32[2]{0}', space=sflag, size = 0x8, scoped, tag = 'scoped memory for tpu_custom_call.1']
    #allocation7 [shape = 'u8[6144]{0}', space=vmem, size = 0x1800, scoped, tag = 'input window, operand 1']
    #allocation8 [shape = 's32[2]{0}', space=sflag, size = 0x8, scoped, tag = 'scoped memory for tpu_custom_call.1']
    %7 = vsyncpa [#allocation6], 0
    %s8 = scalar_lea.sflag [#allocation6], 1
    %9 = vsyncpa %s8, 0
    %10 = vsyncpa [#allocation8], 0
    %s11 = scalar_lea.sflag [#allocation8], 1
    %12 = vsyncpa %s11, 0
    loop: start=0, step=1, limit=4
    $region2: #{tpu_custom_call.1} parent=1 // loop_pre_header
      _
    $region3: #{tpu_custom_call.1} parent=1 // loop_header
      %s14 = sphi 0, %s18
      %p15 = scmp.ge.s32.totalorder %s14, 4
      %s21 = sphi 0, %s33
      %s22 = sphi 0, %s29
      %s23 = sphi 0, %s21
      %s24 = sphi 0, %s22
      %s25 = sphi 0, %s23
      %s26 = sphi 0, %s24
      %s38 = sphi 0, %s40
      %s41 = sphi 0, %s38
      %s42 = sphi 0, %s41
      %s58 = sphi 0, %s42
      %s66 = sphi 0, %s68
      %s69 = sphi 0, %s66
      %s70 = sphi 0, %s69
      %s86 = sphi 0, %s70
      %s92 = sphi 0, %s94
      %s95 = sphi 0, %s92
      %s96 = sphi 0, %s95
      %s112 = sphi 0, %s96
    $region4: #{tpu_custom_call.1} parent=1 // loop_header_branch
      %17 = sbr.rel (%p15) target = $region8
    $region5: #{tpu_custom_call.1} parent=1 // loop_body
      %s19 = ssub.s32 %s14, 1
      %s20 = ssub.s32 %s14, 2
      %s27 = sadd.s32 1, %s22
      %p28 = scmp.ge.s32.totalorder %s27, 1
      %s29 = scalar_select %p28, 0, %s27
      %s30 = sadd.s32 1, %s21
      %s31 = scalar_select %p28, %s30, %s21
      %p32 = scmp.ge.s32.totalorder %s31, 2
      %s33 = scalar_select %p32, 0, %s31
      %s34 = ssub.s32 %s21, %s33
      %s35 = ssub.s32 %s22, %s29
      %s36 = sor.u32 %s34, %s35
      %p37 = scmp.eq.s32.totalorder %s36, 0
      %s39 = sadd.s32 %s38, 1
      %s40 = scalar_select %p37, %s38, %s39
      %p43 = pneg %p37
      %p44 = scmp.eq.s32.totalorder %s14, 1
      %p45 = por %p43, %p44
      %p46 = scmp.ne.s32.totalorder %s38, %s41
      %p47 = scmp.eq.s32.totalorder %s14, 0
      %p48 = por %p46, %p47
      %p49 = scmp.ne.s32.totalorder %s38, %s41
      %p50 = scmp.eq.s32.totalorder %s19, 1
      %p51 = por %p49, %p50
      %p52 = scmp.ne.s32.totalorder %s41, %s42
      %p53 = scmp.eq.s32.totalorder %s19, 0
      %p54 = por %p52, %p53
      %p55 = scmp.ne.s32.totalorder %s41, %s42
      %p56 = scmp.eq.s32.totalorder %s20, 1
      %p57 = por %p55, %p56
      %p59 = scmp.ne.s32.totalorder %s42, %s58
      %p60 = scmp.eq.s32.totalorder %s20, 0
      %p61 = por %p59, %p60
      %s62 = ssub.s32 %s21, %s33
      %s63 = ssub.s32 %s22, %s29
      %s64 = sor.u32 %s62, %s63
      %p65 = scmp.eq.s32.totalorder %s64, 0
      %s67 = sadd.s32 %s66, 1
      %s68 = scalar_select %p65, %s66, %s67
      %p71 = pneg %p65
      %p72 = scmp.eq.s32.totalorder %s14, 1
      %p73 = por %p71, %p72
      %p74 = scmp.ne.s32.totalorder %s66, %s69
      %p75 = scmp.eq.s32.totalorder %s14, 0
      %p76 = por %p74, %p75
      %p77 = scmp.ne.s32.totalorder %s66, %s69
      %p78 = scmp.eq.s32.totalorder %s19, 1
      %p79 = por %p77, %p78
      %p80 = scmp.ne.s32.totalorder %s69, %s70
      %p81 = scmp.eq.s32.totalorder %s19, 0
      %p82 = por %p80, %p81
      %p83 = scmp.ne.s32.totalorder %s69, %s70
      %p84 = scmp.eq.s32.totalorder %s20, 1
      %p85 = por %p83, %p84
      %p87 = scmp.ne.s32.totalorder %s70, %s86
      %p88 = scmp.eq.s32.totalorder %s20, 0
      %p89 = por %p87, %p88
      %s90 = ssub.s32 %s21, %s33
      %p91 = scmp.eq.s32.totalorder %s90, 0
      %s93 = sadd.s32 %s92, 1
      %s94 = scalar_select %p91, %s92, %s93
      %p97 = pneg %p91
      %p98 = scmp.eq.s32.totalorder %s14, 1
      %p99 = por %p97, %p98
      %p100 = scmp.ne.s32.totalorder %s92, %s95
      %p101 = scmp.eq.s32.totalorder %s14, 0
      %p102 = por %p100, %p101
      %p103 = scmp.ne.s32.totalorder %s92, %s95
      %p104 = scmp.eq.s32.totalorder %s19, 1
      %p105 = por %p103, %p104
      %p106 = scmp.ne.s32.totalorder %s95, %s96
      %p107 = scmp.eq.s32.totalorder %s19, 0
      %p108 = por %p106, %p107
      %p109 = scmp.ne.s32.totalorder %s95, %s96
      %p110 = scmp.eq.s32.totalorder %s20, 1
      %p111 = por %p109, %p110
      %p113 = scmp.ne.s32.totalorder %s96, %s112
      %p114 = scmp.eq.s32.totalorder %s20, 0
      %p115 = por %p113, %p114
      %p116 = scmp.le.s32.totalorder 1, %s14
      %p117 = scmp.lt.s32.totalorder %s14, 3
      %p118 = pnand %p116, %p117
      %p119 = pneg %p118
      // Predicated region
      $region9: #{tpu_custom_call.1} parent=5 // pred_check
        _
      $region10: #{tpu_custom_call.1} parent=5 // pred_check_branch
        %121 = sbr.rel (%p118) target = $region12
      $region11: #{tpu_custom_call.1} parent=5 // pred_region
        %s122 = ssub.s32 %s14, 1
      $region12: #{tpu_custom_call.1} parent=5 // pred_fallthru
        _
      %p123 = scmp.lt.s32.totalorder %s14, 2
      // Predicated region
      $region13: #{tpu_custom_call.1} parent=5 // pred_check
        %p124 = pneg %p123
      $region14: #{tpu_custom_call.1} parent=5 // pred_check_branch
        %126 = sbr.rel (%p124) target = $region16
      $region15: #{tpu_custom_call.1} parent=5 // pred_region
        // Predicated region
        $region17: #{tpu_custom_call.1} parent=15 // pred_check
          %p127 = pneg %p48
        $region18: #{tpu_custom_call.1} parent=15 // pred_check_branch
          %129 = sbr.rel (%p127) target = $region20
        $region19: #{tpu_custom_call.1} parent=15 // pred_region
          %s130 = sand.u32 %s38, 1
          %s131 = scalar_lea.sflag [#allocation6], %s130
          %s132 = sand.u32 %s38, 1
          %s133 = scalar_lea.vmem [#allocation5], %s132
          %s135 = ssub.s32 16, 16
          %136 = vsyncadd %s131, %s135
          %s137 = sadd.s32 %s22, %s21
          %s138 = smul.addr %s137, 16
          %s139 = scalar_lea.hbm %s0, %s138
          %s141 = sshll.u32 %s133, 4
          %s142 = int_to_ptr.vmem [resolvable:$true] %s141
          %144 = dma.hbm_to_vmem [thread:$0]  %s139, 16, %s142, %s131
        $region20: #{tpu_custom_call.1} parent=15 // pred_fallthru
          _
        // Predicated region
        $region21: #{tpu_custom_call.1} parent=15 // pred_check
          %p145 = pneg %p76
        $region22: #{tpu_custom_call.1} parent=15 // pred_check_branch
          %147 = sbr.rel (%p145) target = $region24
        $region23: #{tpu_custom_call.1} parent=15 // pred_region
          %s148 = sand.u32 %s66, 1
          %s149 = scalar_lea.sflag [#allocation8], %s148
          %s150 = sand.u32 %s66, 1
          %s151 = smul.addr %s150, 6
          %s152 = scalar_lea.vmem [#allocation7], %s151
          %s154 = ssub.s32 96, 96
          %155 = vsyncadd %s149, %s154
          %s156 = smul.addr %s21, 3
          %s157 = sadd.s32 %s22, %s156
          %s158 = smul.addr %s157, 32
          %s159 = scalar_lea.hbm %s1, %s158
          %s160 = sshll.u32 %s152, 4
          %s161 = int_to_ptr.vmem [resolvable:$true] %s160
          %166 = dma.hbm_to_vmem [thread:$0]  %s159, 96, %s161, %s149, 32, 32, 2
        $region24: #{tpu_custom_call.1} parent=15 // pred_fallthru
          _
      $region16: #{tpu_custom_call.1} parent=5 // pred_fallthru
        _
      %p167 = scmp.le.s32.totalorder 1, %s14
      %p168 = scmp.lt.s32.totalorder %s14, 3
      %p169 = pnand %p167, %p168
      %p170 = pneg %p169
      // Predicated region
      $region25: #{tpu_custom_call.1} parent=5 // pred_check
        _
      $region26: #{tpu_custom_call.1} parent=5 // pred_check_branch
        %172 = sbr.rel (%p169) target = $region28
      $region27: #{tpu_custom_call.1} parent=5 // pred_region
        %s173 = ssub.s32 %s14, 1
        %s174 = sand.u32 %s41, 1
        %s175 = scalar_lea.sflag [#allocation6], %s174
        %s176 = sand.u32 %s41, 1
        %s177 = scalar_lea.vmem [#allocation5], %s176
        // Predicated region
        $region29: #{tpu_custom_call.1} parent=27 // pred_check
          %p178 = pneg %p54
        $region30: #{tpu_custom_call.1} parent=27 // pred_check_branch
          %180 = sbr.rel (%p178) target = $region32
        $region31: #{tpu_custom_call.1} parent=27 // pred_region
          %181 = dma.done %s175, 16
        $region32: #{tpu_custom_call.1} parent=27 // pred_fallthru
          _
        %s182 = sand.u32 %s69, 1
        %s183 = scalar_lea.sflag [#allocation8], %s182
        %s184 = sand.u32 %s69, 1
        %s185 = smul.addr %s184, 6
        %s186 = scalar_lea.vmem [#allocation7], %s185
        // Predicated region
        $region33: #{tpu_custom_call.1} parent=27 // pred_check
          %p187 = pneg %p82
        $region34: #{tpu_custom_call.1} parent=27 // pred_check_branch
          %189 = sbr.rel (%p187) target = $region36
        $region35: #{tpu_custom_call.1} parent=27 // pred_region
          %190 = dma.done %s183, 96
        $region36: #{tpu_custom_call.1} parent=27 // pred_fallthru
          _
        %s191 = sand.u32 %s41, 1
        %s192 = scalar_lea.sflag [#allocation6], %s191
        %s193 = sand.u32 %s41, 1
        %s194 = scalar_lea.vmem [#allocation5], %s193
        %p195 = pneg %p54
        %p196 = pneg %p51
        %s197 = sand.u32 %s69, 1
        %s198 = scalar_lea.sflag [#allocation8], %s197
        %s199 = sand.u32 %s69, 1
        %s200 = smul.addr %s199, 6
        %s201 = scalar_lea.vmem [#allocation7], %s200
        %p202 = pneg %p82
        %p203 = pneg %p79
        %p204 = pneg %p108
        %p205 = pneg %p105
        %p206 = scmp.lt.s32.totalorder %s23, 1
        %s207 = scalar_select %p206, %s23, 1
        %s208 = smul.addr %s207, 4
        %s209 = scalar_lea.vmem %s2, %s208
        %p210 = scmp.lt.s32.totalorder %s23, 1
        %s211 = scalar_select %p210, %s23, 1
        %s212 = smul.addr %s211, 4
        %s213 = scalar_lea.vmem %s2, %s212
        %p214 = scmp.eq.s32.totalorder %s24, 0
        // Predicated region
        $region37: #{tpu_custom_call.1} parent=27 // pred_check
          %p215 = pneg %p214
        $region38: #{tpu_custom_call.1} parent=27 // pred_check_branch
          %217 = sbr.rel (%p215) target = $region40
        $region39: #{tpu_custom_call.1} parent=27 // pred_region
          %218 = vst [vmem:[#allocation2] sm:$0x3] 0.0
          %219 = vst [vmem:[#allocation2 + $0x2] sm:$0x3] 0.0
          %220 = vst [vmem:[#allocation2 + $0x4] sm:$0x3] 0.0
          %221 = vst [vmem:[#allocation3] sm:$0x3] 0.0
          %222 = vst [vmem:[#allocation3 + $0x2] sm:$0x3] 0.0
          %223 = vst [vmem:[#allocation3 + $0x4] sm:$0x3] 0.0
          %224 = vst [vmem:[#allocation4] sm:$0x3] 0.0
          %225 = vst [vmem:[#allocation4 + $0x2] sm:$0x3] 0.0
          %226 = vst [vmem:[#allocation4 + $0x4] sm:$0x3] 0.0
        $region40: #{tpu_custom_call.1} parent=27 // pred_fallthru
          _
        %v227 = vld [vmem:[%s177] sm:$0x1]
        %v228 = vunpack.c.0.s8 %v227
        %v229 = vld [vmem:[%s186] sm:$0x3]
        %s230 = scalar_lea.vmem %s186, 2 [#allocation7]
        %v231 = vld [vmem:[%s230] sm:$0x3]
        %s232 = scalar_lea.vmem %s186, 4 [#allocation7]
        %v233 = vld [vmem:[%s232] sm:$0x3]
        %v234 = vmax.f32 %v229, %v231
        %v235 = vmax.f32 %v234, %v233
        %v236 = vsub.f32 %v229, %v235
        %v237 = vmul.f32 %v236, 1.442695
        %v238 = vpow.pop %v237
        %v239 = vsub.f32 %v231, %v235
        %v240 = vmul.f32 %v239, 1.442695
        %v241 = vpow.pop %v240
        %v242 = vsub.f32 %v233, %v235
        %v243 = vmul.f32 %v242, 1.442695
        %v244 = vpow.pop %v243
        %v245 = vadd.f32 %v238, %v241
        %v246 = vadd.f32 %v245, %v244
        %v247 = vrcp.pop %v246
        %v248 = vmul.f32 %v238, %v247
        %vm249 = vcmp.eq.s32.totalorder %v228, 0
        %v250 = vsel %vm249, 1, 0
        %v251 = vcvt.s32.f32 %v250
        %v252 = vld [vmem:[#allocation2] sm:$0x3]
        %v253 = vmul.f32 %v248, %v251
        %v254 = vadd.f32 %v252, %v253
        %255 = vst [vmem:[#allocation2] sm:$0x3] %v254
        %v256 = vld [vmem:[#allocation3] sm:$0x3]
        %v257 = vadd.f32 %v256, %v248
        %258 = vst [vmem:[#allocation3] sm:$0x3] %v257
        %v259 = vld [vmem:[#allocation4] sm:$0x3]
        %v260 = vadd.f32 %v259, %v251
        %261 = vst [vmem:[#allocation4] sm:$0x3] %v260
        %v262 = vmul.f32 %v241, %v247
        %vm263 = vcmp.eq.s32.totalorder %v228, 1
        %v264 = vsel %vm263, 1, 0
        %v265 = vcvt.s32.f32 %v264
        %s266 = scalar_lea.vmem [#allocation2], 2
        %v267 = vld [vmem:[%s266] sm:$0x3]
        %v268 = vmul.f32 %v262, %v265
        %v269 = vadd.f32 %v267, %v268
        %270 = vst [vmem:[%s266] sm:$0x3] %v269
        %s271 = scalar_lea.vmem [#allocation3], 2
        %v272 = vld [vmem:[%s271] sm:$0x3]
        %v273 = vadd.f32 %v272, %v262
        %274 = vst [vmem:[%s271] sm:$0x3] %v273
        %s275 = scalar_lea.vmem [#allocation4], 2
        %v276 = vld [vmem:[%s275] sm:$0x3]
        %v277 = vadd.f32 %v276, %v265
        %278 = vst [vmem:[%s275] sm:$0x3] %v277
        %v279 = vmul.f32 %v244, %v247
        %vm280 = vcmp.eq.s32.totalorder %v228, 2
        %v281 = vsel %vm280, 1, 0
        %v282 = vcvt.s32.f32 %v281
        %s283 = scalar_lea.vmem [#allocation2], 4
        %v284 = vld [vmem:[%s283] sm:$0x3]
        %v285 = vmul.f32 %v279, %v282
        %v286 = vadd.f32 %v284, %v285
        %287 = vst [vmem:[%s283] sm:$0x3] %v286
        %s288 = scalar_lea.vmem [#allocation3], 4
        %v289 = vld [vmem:[%s288] sm:$0x3]
        %v290 = vadd.f32 %v289, %v279
        %291 = vst [vmem:[%s288] sm:$0x3] %v290
        %s292 = scalar_lea.vmem [#allocation4], 4
        %v293 = vld [vmem:[%s292] sm:$0x3]
        %v294 = vadd.f32 %v293, %v282
        %295 = vst [vmem:[%s292] sm:$0x3] %v294
        // Predicated region
        $region41: #{tpu_custom_call.1} parent=27 // pred_check
          %p296 = pneg %p214
        $region42: #{tpu_custom_call.1} parent=27 // pred_check_branch
          %298 = sbr.rel (%p296) target = $region44
        $region43: #{tpu_custom_call.1} parent=27 // pred_region
          %v299 = vld [vmem:[#allocation2] sm:$0x3]
          %v300 = vld [vmem:[#allocation2 + $0x2] sm:$0x3]
          %v301 = vld [vmem:[#allocation2 + $0x4] sm:$0x3]
          %vm302 = vcmask 1041408
          %v303 = vsel %vm302, %v299, 0.0
          %304 = vadd.xlane.f32.xlu0 %v303
          %v305 = vpop.xlane.xlu0 %304
          %v306 = vsel %vm302, %v300, 0.0
          %307 = vadd.xlane.f32.xlu0 %v306
          %v308 = vpop.xlane.xlu0 %307
          %v309 = vsel %vm302, %v301, 0.0
          %310 = vadd.xlane.f32.xlu0 %v309
          %v311 = vpop.xlane.xlu0 %310
          %v312 = vsel %vm302, %v305, 0.0
          %v313 = vrot.slane %v312, 4
          %v314 = vadd.f32 %v312, %v313
          %v315 = vrot.slane %v314, 2
          %v316 = vadd.f32 %v314, %v315
          %v317 = vrot.slane %v316, 1
          %v318 = vadd.f32 %v316, %v317
          %v319 = vsel %vm302, %v308, 0.0
          %v320 = vrot.slane %v319, 4
          %v321 = vadd.f32 %v319, %v320
          %v322 = vrot.slane %v321, 2
          %v323 = vadd.f32 %v321, %v322
          %v324 = vrot.slane %v323, 1
          %v325 = vadd.f32 %v323, %v324
          %v326 = vsel %vm302, %v311, 0.0
          %v327 = vrot.slane %v326, 4
          %v328 = vadd.f32 %v326, %v327
          %v329 = vrot.slane %v328, 2
          %v330 = vadd.f32 %v328, %v329
          %v331 = vrot.slane %v330, 1
          %v332 = vadd.f32 %v330, %v331
          %v333 = vld [vmem:[#allocation3] sm:$0x3]
          %v334 = vld [vmem:[#allocation3 + $0x2] sm:$0x3]
          %v335 = vld [vmem:[#allocation3 + $0x4] sm:$0x3]
          %v336 = vsel %vm302, %v333, 0.0
          %337 = vadd.xlane.f32.xlu0 %v336
          %v338 = vpop.xlane.xlu0 %337
          %v339 = vsel %vm302, %v334, 0.0
          %340 = vadd.xlane.f32.xlu0 %v339
          %v341 = vpop.xlane.xlu0 %340
          %v342 = vsel %vm302, %v335, 0.0
          %343 = vadd.xlane.f32.xlu0 %v342
          %v344 = vpop.xlane.xlu0 %343
          %v345 = vsel %vm302, %v338, 0.0
          %v346 = vrot.slane %v345, 4
          %v347 = vadd.f32 %v345, %v346
          %v348 = vrot.slane %v347, 2
          %v349 = vadd.f32 %v347, %v348
          %v350 = vrot.slane %v349, 1
          %v351 = vadd.f32 %v349, %v350
          %v352 = vsel %vm302, %v341, 0.0
          %v353 = vrot.slane %v352, 4
          %v354 = vadd.f32 %v352, %v353
          %v355 = vrot.slane %v354, 2
          %v356 = vadd.f32 %v354, %v355
          %v357 = vrot.slane %v356, 1
          %v358 = vadd.f32 %v356, %v357
          %v359 = vsel %vm302, %v344, 0.0
          %v360 = vrot.slane %v359, 4
          %v361 = vadd.f32 %v359, %v360
          %v362 = vrot.slane %v361, 2
          %v363 = vadd.f32 %v361, %v362
          %v364 = vrot.slane %v363, 1
          %v365 = vadd.f32 %v363, %v364
          %v366 = vld [vmem:[#allocation4] sm:$0x3]
          %v367 = vld [vmem:[#allocation4 + $0x2] sm:$0x3]
          %v368 = vld [vmem:[#allocation4 + $0x4] sm:$0x3]
          %v369 = vsel %vm302, %v366, 0.0
          %370 = vadd.xlane.f32.xlu0 %v369
          %v371 = vpop.xlane.xlu0 %370
          %v372 = vsel %vm302, %v367, 0.0
          %373 = vadd.xlane.f32.xlu0 %v372
          %v374 = vpop.xlane.xlu0 %373
          %v375 = vsel %vm302, %v368, 0.0
          %376 = vadd.xlane.f32.xlu0 %v375
          %v377 = vpop.xlane.xlu0 %376
          %v378 = vsel %vm302, %v371, 0.0
          %v379 = vrot.slane %v378, 4
          %v380 = vadd.f32 %v378, %v379
          %v381 = vrot.slane %v380, 2
          %v382 = vadd.f32 %v380, %v381
          %v383 = vrot.slane %v382, 1
          %v384 = vadd.f32 %v382, %v383
          %v385 = vsel %vm302, %v374, 0.0
          %v386 = vrot.slane %v385, 4
          %v387 = vadd.f32 %v385, %v386
          %v388 = vrot.slane %v387, 2
          %v389 = vadd.f32 %v387, %v388
          %v390 = vrot.slane %v389, 1
          %v391 = vadd.f32 %v389, %v390
          %v392 = vsel %vm302, %v377, 0.0
          %v393 = vrot.slane %v392, 4
          %v394 = vadd.f32 %v392, %v393
          %v395 = vrot.slane %v394, 2
          %v396 = vadd.f32 %v394, %v395
          %v397 = vrot.slane %v396, 1
          %v398 = vadd.f32 %v396, %v397
          %vm402 = vcmask 1041409
          %v403 = vsel %vm402, %v325, %v318
          %vm404 = vcmask 1042434
          %v405 = vsel %vm404, %v332, %v403
          %v410 = vsel %vm402, %v358, %v351
          %v411 = vsel %vm404, %v365, %v410
          %v416 = vsel %vm402, %v391, %v384
          %v417 = vsel %vm404, %v398, %v416
          %vm419 = vcmask 7168
          %v420 = vsel %vm419, %v405, %v411
          %vm421 = vcmask 15360
          %v422 = vsel %vm421, %v420, %v417
          %vm423 = vcmask 18432
          %424 = vst.msk [vmem:[%s213] sm:$0x7] %vm423, %v422
        $region44: #{tpu_custom_call.1} parent=27 // pred_fallthru
          _
        %p425 = scmp.lt.s32.totalorder %s23, 1
        %s426 = scalar_select %p425, %s23, 1
        %s427 = smul.addr %s426, 4
        %s428 = scalar_lea.vmem %s2, %s427
        // Predicated region
        $region45: #{tpu_custom_call.1} parent=27 // pred_check
          %p429 = pneg %p105
        $region46: #{tpu_custom_call.1} parent=27 // pred_check_branch
          %431 = sbr.rel (%p429) target = $region48
        $region47: #{tpu_custom_call.1} parent=27 // pred_region
          _
        $region48: #{tpu_custom_call.1} parent=27 // pred_fallthru
          _
      $region28: #{tpu_custom_call.1} parent=5 // pred_fallthru
        _
      %p432 = scmp.le.s32.totalorder 2, %s14
      // Predicated region
      $region49: #{tpu_custom_call.1} parent=5 // pred_check
        %p433 = pneg %p432
      $region50: #{tpu_custom_call.1} parent=5 // pred_check_branch
        %435 = sbr.rel (%p433) target = $region52
      $region51: #{tpu_custom_call.1} parent=5 // pred_region
        %s436 = ssub.s32 %s14, 2
        // Predicated region
        $region53: #{tpu_custom_call.1} parent=51 // pred_check
          %p437 = pneg %p111
        $region54: #{tpu_custom_call.1} parent=51 // pred_check_branch
          %439 = sbr.rel (%p437) target = $region56
        $region55: #{tpu_custom_call.1} parent=51 // pred_region
          %p440 = scmp.lt.s32.totalorder %s25, 1
          %s441 = scalar_select %p440, %s25, 1
          %s442 = smul.addr %s441, 4
          %s443 = scalar_lea.vmem %s2, %s442
        $region56: #{tpu_custom_call.1} parent=51 // pred_fallthru
          _
      $region52: #{tpu_custom_call.1} parent=5 // pred_fallthru
        _
    $region6: #{tpu_custom_call.1} parent=1 // loop_footer
      %s18 = sadd.s32 1, %s14
    $region7: #{tpu_custom_call.1} parent=1 // loop_footer_branch
      %13 = sbr.rel target = $region3
    $region8: #{tpu_custom_call.1} parent=1 // loop_exit
      _
    %444 = vsyncpa [#allocation6], 1
    %s445 = scalar_lea.sflag [#allocation6], 1
    %446 = vsyncpa %s445, 1
    %447 = vsyncpa [#allocation8], 1
    %s448 = scalar_lea.sflag [#allocation8], 1
    %449 = vsyncpa %s448, 1

</llo_original>
